<compile_context>
chip_gen: v5e
topology: v5e:2x2
jax: 0.10.0
libtpu: 0.0.40
codegen_flags: <defaults>
</compile_context>

<pallas_src>
import functools

import jax
import jax.numpy as jnp
from jax.experimental import pallas as pl
from jax.experimental.pallas import tpu as pltpu

IN_EPS = 1e-3   # InstanceNorm2d eps (as in the module)
BN_EPS = 1e-5   # BatchNorm2d default eps
LANE = 128      # TPU lane width


def _oafilter_kernel(x_ref, cp_ref, pp_ref, w1_ref, w2t_ref, w3_ref, o_ref,
                     *, inv_n, mm_dtype, needs_mask):
    f32 = jnp.float32
    x = x_ref[...]                                   # [C, Np] f32, pad cols are 0

    # Packed per-channel params, used as [C, 1] column broadcasts.
    s1 = cp_ref[:, 0:1]
    t1 = cp_ref[:, 1:2]
    b1 = cp_ref[:, 2:3]
    s3 = cp_ref[:, 3:4]
    t3 = cp_ref[:, 4:5]
    b3 = cp_ref[:, 5:6]
    # Packed per-point params, used as [1, Np] row broadcasts (zero on pad).
    s2 = pp_ref[0:1, :]
    t2 = pp_ref[1:2, :]
    b2 = pp_ref[2:3, :]

    # ---- conv1: InstanceNorm2d(C) -> BatchNorm2d(C) -> ReLU -> 1x1 conv ----
    # One-pass variance; pad columns of x are zero so the padded-lane sums are
    # exact, and we divide by the true N (not Np).
    # NOTE: E[x^2] - mu^2 in f32 can cancel if |mu| >> sigma; inputs to this
    # block are roughly centered feature maps, so the one-pass form is kept.
    sx = jnp.sum(x, axis=-1, keepdims=True)
    sxx = jnp.sum(x * x, axis=-1, keepdims=True)
    mu = sx * inv_n
    var = sxx * inv_n - mu * mu
    # Fused IN + folded-BN affine: (x - mu)*rsqrt(var+eps)*s1 + t1 == x*a1 + c1
    a1 = jax.lax.rsqrt(var + IN_EPS) * s1            # [C, 1]
    c1 = t1 - mu * a1                                # [C, 1]
    h = jnp.maximum(x * a1 + c1, 0.0)
    # MXU note: K = C (128 at prod) half-fills the 256-deep v6e/v7x MXU;
    # accepted -- conv2 below dominates the flops with K = Np.
    y = jnp.dot(w1_ref[...], h.astype(mm_dtype),
                preferred_element_type=f32) + b1     # [O, Np], f32 accumulation

    # ---- conv2 (treats "points" as channels): BN(N) -> ReLU -> 1x1 conv ----
    # s2/t2 are zero on pad cols -> h2 pad cols are 0; W2T pad rows/cols are
    # zero -> z2 is exact on real cols without masking y first.
    h2 = jnp.maximum(y * s2 + t2, 0.0)               # folded BN over points + ReLU
    z2 = jnp.dot(h2.astype(mm_dtype), w2t_ref[...],
                 preferred_element_type=f32) + b2
    y2 = y + z2                                      # out = out + conv2(out), f32
    if needs_mask:
        # Single mask pass: zero the pad columns so conv3's instance-norm
        # reductions below stay exact (only place the mask is required).
        y2 = y2 * pp_ref[3:4, :]

    # ---- conv3: InstanceNorm2d(O) -> BatchNorm2d(O) -> ReLU -> 1x1 conv ----
    sy = jnp.sum(y2, axis=-1, keepdims=True)
    syy = jnp.sum(y2 * y2, axis=-1, keepdims=True)
    mu3 = sy * inv_n
    var3 = syy * inv_n - mu3 * mu3
    a3 = jax.lax.rsqrt(var3 + IN_EPS) * s3
    c3 = t3 - mu3 * a3
    h3 = jnp.maximum(y2 * a3 + c3, 0.0)
    w = jnp.dot(w3_ref[...], h3.astype(mm_dtype),
                preferred_element_type=f32) + b3

    # Identity shortcut (O == C): read the residual straight from the input
    # block so x need not be held live across the whole body.
    o_ref[...] = w + x_ref[...]


def oafilter_forward(x, params, *, matmul_dtype=jnp.bfloat16):
    """x: [B, C, N, 1] float32.  params: dict of BN/conv params (see init)."""
    B, C, N, W = x.shape
    assert W == 1
    O = params["W1"].shape[0]
    assert O == C, "shot_cut path not needed when out_channels == channels"

    Np = ((N + LANE - 1) // LANE) * LANE             # points padded to lane multiple
    needs_mask = (Np != N)

    x3 = x[..., 0]                                   # [B, C, N]
    if needs_mask:
        x3 = jnp.pad(x3, ((0, 0), (0, 0), (0, Np - N)))

    def fold_bn(g, b, rm, rv):
        s = g / jnp.sqrt(rv + BN_EPS)
        return s, b - rm * s

    s1, t1 = fold_bn(params["g1"], params["be1"], params["rm1"], params["rv1"])
    s2, t2 = fold_bn(params["g2"], params["be2"], params["rm2"], params["rv2"])
    s3, t3 = fold_bn(params["g3"], params["be3"], params["rm3"], params["rv3"])

    # Pack the per-channel vectors into one [C, 6] tile (cols: s1,t1,b1,s3,t3,b3)
    cpack = jnp.stack([s1, t1, params["b1"], s3, t3, params["b3"]],
                      axis=1).astype(jnp.float32)

    # Pack the per-point vectors into one [PR, Np] tile (rows: s2,t2,b2[,mask]),
    # zero-padded beyond the real N.  Mask row only exists when padding does.
    padN = (lambda v: jnp.pad(v, (0, Np - N))) if needs_mask else (lambda v: v)
    prows = [padN(s2), padN(t2), padN(params["b2"])]
    if needs_mask:
        prows.append((jnp.arange(Np) < N).astype(jnp.float32))
    ppack = jnp.stack(prows, axis=0).astype(jnp.float32)
    PR = ppack.shape[0]

    # Weights pre-cast to the MXU operand dtype; W2 transposed + zero-padded.
    W1 = params["W1"].astype(matmul_dtype)                      # [O, C]
    W3 = params["W3"].astype(matmul_dtype)                      # [O, O]
    W2T = params["W2"].T
    if needs_mask:
        W2T = jnp.pad(W2T, ((0, Np - N), (0, Np - N)))
    W2T = W2T.astype(matmul_dtype)                              # [Np, Np]

    kernel = functools.partial(_oafilter_kernel, inv_n=1.0 / N,
                               mm_dtype=matmul_dtype, needs_mask=needs_mask)

    # Grid-invariant operands: single-buffered (index map is constant over B,
    # so a second pipeline buffer would never be used).
    const2d = lambda shape: pl.BlockSpec(shape, lambda b: (0, 0),
                                         pipeline_mode=pl.Buffered(1))
    in_specs = [
        pl.BlockSpec((None, C, Np), lambda b: (b, 0, 0)),       # x, per batch
        const2d((C, 6)),                                        # packed channel params
        const2d((PR, Np)),                                      # packed point params
        const2d((O, C)),                                        # W1
        const2d((Np, Np)),                                      # W2.T
        const2d((O, O)),                                        # W3
    ]

    # Honest per-step VMEM footprint:
    #   * x + out blocks, 2-deep pipelined, f32
    #   * ~6 live [C, Np] f32 intermediates (h, y, h2, z2, y2, h3)
    #   * single-buffered packed params (f32) and weights (matmul dtype)
    bpe_mm = jnp.dtype(matmul_dtype).itemsize
    act_bytes = 2 * 2 * C * Np * 4
    live_bytes = 6 * C * Np * 4
    par_bytes = (C * 6 + PR * Np) * 4
    w_bytes = (O * C + O * O + Np * Np) * bpe_mm
    need = act_bytes + live_bytes + par_bytes + w_bytes

    # Generation-aware cap: ~80% of physical VMEM (64 MiB/TC on v7x,
    # 128 MiB on v5e/v6e) instead of a hard constant that can exceed v7x.
    try:
        vmem_cap = int(pltpu.get_tpu_info().vmem_capacity_bytes)
    except Exception:                                 # pragma: no cover - fallback
        vmem_cap = 128 * 1024 * 1024
    vmem_limit = int(min(max(32 * 1024 * 1024, 2 * need),
                         int(0.8 * vmem_cap)))

    out = pl.pallas_call(
        kernel,
        out_shape=jax.ShapeDtypeStruct((B, C, Np), jnp.float32),
        grid=(B,),
        in_specs=in_specs,
        out_specs=pl.BlockSpec((None, C, Np), lambda b: (b, 0, 0)),
        compiler_params=pltpu.CompilerParams(
            dimension_semantics=("parallel",),
            vmem_limit_bytes=vmem_limit),
    )(x3, cpack, ppack, W1, W2T, W3)

    return out[:, :, :N, None]                       # back to [B, C, N, 1]


# ----------------------------- reference (plain JAX, PyTorch layout) ---------
def oafilter_reference(x, p):
    def inorm(v):
        mu = v.mean(axis=(2, 3), keepdims=True)
        var = ((v - mu) ** 2).mean(axis=(2, 3), keepdims=True)
        return (v - mu) / jnp.sqrt(var + IN_EPS)

    def bnorm(v, g, b, rm, rv):
        s = g / jnp.sqrt(rv + BN_EPS)
        return v * s[None, :, None, None] + (b - rm * s)[None, :, None, None]

    def conv1x1(v, W, b):
        return jnp.einsum("oc,bchw->bohw", W, v) + b[None, :, None, None]

    h = jnp.maximum(bnorm(inorm(x), p["g1"], p["be1"], p["rm1"], p["rv1"]), 0.0)
    out = conv1x1(h, p["W1"], p["b1"])
    out = jnp.transpose(out, (0, 2, 1, 3))           # trans(1,2)
    h2 = jnp.maximum(bnorm(out, p["g2"], p["be2"], p["rm2"], p["rv2"]), 0.0)
    out = out + conv1x1(h2, p["W2"], p["b2"])
    out = jnp.transpose(out, (0, 2, 1, 3))           # trans(1,2)
    h3 = jnp.maximum(bnorm(inorm(out), p["g3"], p["be3"], p["rm3"], p["rv3"]), 0.0)
    out = conv1x1(h3, p["W3"], p["b3"])
    return out + x


# ----------------------------- deterministic parameter init ------------------
def init_params(key, channels, points):
    C, N, O = channels, points, channels
    ks = jax.random.split(key, 12)
    u = lambda k, s, lo=-0.5, hi=0.5: jax.random.uniform(k, s, jnp.float32, lo, hi)
    return {
        # BN1 (channels)
        "g1": u(ks[0], (C,), 0.5, 1.5), "be1": u(ks[1], (C,)),
        "rm1": u(ks[2], (C,)), "rv1": u(ks[3], (C,), 0.5, 1.5),
        # conv1 1x1
        "W1": u(ks[4], (O, C)), "b1": u(ks[5], (O,)),
        # BN2 (points)
        "g2": u(ks[6], (N,), 0.5, 1.5), "be2": u(ks[7], (N,)),
        "rm2": u(ks[8], (N,)), "rv2": u(ks[9], (N,), 0.5, 1.5),
        # conv2 1x1 (points -> points)
        "W2": u(ks[10], (N, N)), "b2": u(ks[11], (N,)),
        # BN3 (out_channels)
        "g3": u(jax.random.fold_in(key, 100), (O,), 0.5, 1.5),
        "be3": u(jax.random.fold_in(key, 101), (O,)),
        "rm3": u(jax.random.fold_in(key, 102), (O,)),
        "rv3": u(jax.random.fold_in(key, 103), (O,), 0.5, 1.5),
        # conv3 1x1
        "W3": u(jax.random.fold_in(key, 104), (O, O)),
        "b3": u(jax.random.fold_in(key, 105), (O,)),
    }


if __name__ == "__main__":
    B, C, N = 2, 16, 32                              # batch, channels, points
    key = jax.random.PRNGKey(0)
    kx, kp = jax.random.split(key)
    x = jax.random.normal(kx, (B, C, N, 1), jnp.float32)
    params = init_params(kp, C, N)

    out = oafilter_forward(x, params)
    out = jax.block_until_ready(out)

    ref = oafilter_reference(x, params)
    assert out.shape == (B, C, N, 1)
    # Tolerance accounts for bf16 MXU operands (f32 accumulation); an
    # f32-operand variant (matmul_dtype=jnp.float32) meets 1e-4 if needed.
    assert jnp.allclose(out, ref, atol=5e-2, rtol=5e-2), \
        f"max err {jnp.max(jnp.abs(out - ref))}"
    print("KERNEL_OK")
</pallas_src>

<mosaic_0001>
module attributes {stable_mosaic.version = 11 : i64} {
  func.func @_oafilter_kernel(%arg0: i32, %arg1: memref<1x16x128xf32, #tpu.memory_space<vmem>>, %arg2: memref<16x6xf32, #tpu.memory_space<vmem>>, %arg3: memref<4x128xf32, #tpu.memory_space<vmem>>, %arg4: memref<16x16xbf16, #tpu.memory_space<vmem>>, %arg5: memref<128x128xbf16, #tpu.memory_space<vmem>>, %arg6: memref<16x16xbf16, #tpu.memory_space<vmem>>, %arg7: memref<1x16x128xf32, #tpu.memory_space<vmem>>) attributes {dimension_semantics = [#tpu.dimension_semantics<parallel>], iteration_bounds = array<i64: 2>, scalar_prefetch = 0 : i64, scratch_operands = 0 : i64, tpu.core_type = #tpu.core_type<tc>, window_params = [{transform_indices = @transform_0, window_bounds = array<i64: 1, 16, 128>}, {pipeline_mode = #tpu.pipeline_mode<synchronous>, transform_indices = @transform_1, window_bounds = array<i64: 16, 6>}, {pipeline_mode = #tpu.pipeline_mode<synchronous>, transform_indices = @transform_2, window_bounds = array<i64: 4, 128>}, {pipeline_mode = #tpu.pipeline_mode<synchronous>, transform_indices = @transform_3, window_bounds = array<i64: 16, 16>}, {pipeline_mode = #tpu.pipeline_mode<synchronous>, transform_indices = @transform_4, window_bounds = array<i64: 128, 128>}, {pipeline_mode = #tpu.pipeline_mode<synchronous>, transform_indices = @transform_5, window_bounds = array<i64: 16, 16>}, {transform_indices = @transform_6, window_bounds = array<i64: 1, 16, 128>}]} {
    %c0 = arith.constant 0 : index
    %c0_0 = arith.constant 0 : index
    %c0_1 = arith.constant 0 : index
    %0 = vector.load %arg1[%c0, %c0_0, %c0_1] : memref<1x16x128xf32, #tpu.memory_space<vmem>>, vector<1x16x128xf32>
    %1 = vector.shape_cast %0 : vector<1x16x128xf32> to vector<16x128xf32>
    %c0_2 = arith.constant 0 : index
    %c0_3 = arith.constant 0 : index
    %2 = vector.load %arg2[%c0_2, %c0_3] : memref<16x6xf32, #tpu.memory_space<vmem>>, vector<16x1xf32>
    %c0_4 = arith.constant 0 : index
    %c1 = arith.constant 1 : index
    %3 = vector.load %arg2[%c0_4, %c1] : memref<16x6xf32, #tpu.memory_space<vmem>>, vector<16x1xf32>
    %c0_5 = arith.constant 0 : index
    %c2 = arith.constant 2 : index
    %4 = vector.load %arg2[%c0_5, %c2] : memref<16x6xf32, #tpu.memory_space<vmem>>, vector<16x1xf32>
    %c0_6 = arith.constant 0 : index
    %c3 = arith.constant 3 : index
    %5 = vector.load %arg2[%c0_6, %c3] : memref<16x6xf32, #tpu.memory_space<vmem>>, vector<16x1xf32>
    %c0_7 = arith.constant 0 : index
    %c4 = arith.constant 4 : index
    %6 = vector.load %arg2[%c0_7, %c4] : memref<16x6xf32, #tpu.memory_space<vmem>>, vector<16x1xf32>
    %c0_8 = arith.constant 0 : index
    %c5 = arith.constant 5 : index
    %7 = vector.load %arg2[%c0_8, %c5] : memref<16x6xf32, #tpu.memory_space<vmem>>, vector<16x1xf32>
    %c0_9 = arith.constant 0 : index
    %c0_10 = arith.constant 0 : index
    %8 = vector.load %arg3[%c0_9, %c0_10] : memref<4x128xf32, #tpu.memory_space<vmem>>, vector<1x128xf32>
    %c1_11 = arith.constant 1 : index
    %c0_12 = arith.constant 0 : index
    %9 = vector.load %arg3[%c1_11, %c0_12] : memref<4x128xf32, #tpu.memory_space<vmem>>, vector<1x128xf32>
    %c2_13 = arith.constant 2 : index
    %c0_14 = arith.constant 0 : index
    %10 = vector.load %arg3[%c2_13, %c0_14] : memref<4x128xf32, #tpu.memory_space<vmem>>, vector<1x128xf32>
    %cst = arith.constant dense<0.000000e+00> : vector<16xf32>
    %11 = vector.multi_reduction <add>, %1, %cst [1] : vector<16x128xf32> to vector<16xf32>
    %12 = vector.shape_cast %11 : vector<16xf32> to vector<16x1xf32>
    %13 = arith.mulf %1, %1 : vector<16x128xf32>
    %cst_15 = arith.constant dense<0.000000e+00> : vector<16xf32>
    %14 = vector.multi_reduction <add>, %13, %cst_15 [1] : vector<16x128xf32> to vector<16xf32>
    %15 = vector.shape_cast %14 : vector<16xf32> to vector<16x1xf32>
    %cst_16 = arith.constant 3.125000e-02 : f32
    %16 = vector.broadcast %cst_16 : f32 to vector<16x1xf32>
    %17 = arith.mulf %12, %16 : vector<16x1xf32>
    %cst_17 = arith.constant 3.125000e-02 : f32
    %18 = vector.broadcast %cst_17 : f32 to vector<16x1xf32>
    %19 = arith.mulf %15, %18 : vector<16x1xf32>
    %20 = arith.mulf %17, %17 : vector<16x1xf32>
    %21 = arith.subf %19, %20 : vector<16x1xf32>
    %cst_18 = arith.constant 1.000000e-03 : f32
    %22 = vector.broadcast %cst_18 : f32 to vector<16x1xf32>
    %23 = arith.addf %21, %22 : vector<16x1xf32>
    %24 = math.rsqrt %23 : vector<16x1xf32>
    %25 = arith.mulf %24, %2 : vector<16x1xf32>
    %26 = arith.mulf %17, %25 : vector<16x1xf32>
    %27 = arith.subf %3, %26 : vector<16x1xf32>
    %28 = vector.broadcast %25 : vector<16x1xf32> to vector<16x128xf32>
    %29 = arith.mulf %1, %28 : vector<16x128xf32>
    %30 = vector.broadcast %27 : vector<16x1xf32> to vector<16x128xf32>
    %31 = arith.addf %29, %30 : vector<16x128xf32>
    %cst_19 = arith.constant 0.000000e+00 : f32
    %32 = vector.broadcast %cst_19 : f32 to vector<16x128xf32>
    %33 = arith.maximumf %31, %32 : vector<16x128xf32>
    %c0_20 = arith.constant 0 : index
    %c0_21 = arith.constant 0 : index
    %34 = vector.load %arg4[%c0_20, %c0_21] : memref<16x16xbf16, #tpu.memory_space<vmem>>, vector<16x16xbf16>
    %35 = arith.truncf %33 : vector<16x128xf32> to vector<16x128xbf16>
    %cst_22 = arith.constant dense<0.000000e+00> : vector<16x128xf32>
    %36 = tpu.matmul %34, %35, %cst_22 {dimension_numbers = #tpu.dot_dimension_numbers<[1], [0], [0], [1], [0, 0, 1, 1], [], []>} : vector<16x16xbf16>, vector<16x128xbf16>, vector<16x128xf32> -> vector<16x128xf32>
    %37 = vector.broadcast %4 : vector<16x1xf32> to vector<16x128xf32>
    %38 = arith.addf %36, %37 : vector<16x128xf32>
    %39 = vector.broadcast %8 : vector<1x128xf32> to vector<16x128xf32>
    %40 = arith.mulf %38, %39 : vector<16x128xf32>
    %41 = vector.broadcast %9 : vector<1x128xf32> to vector<16x128xf32>
    %42 = arith.addf %40, %41 : vector<16x128xf32>
    %cst_23 = arith.constant 0.000000e+00 : f32
    %43 = vector.broadcast %cst_23 : f32 to vector<16x128xf32>
    %44 = arith.maximumf %42, %43 : vector<16x128xf32>
    %45 = arith.truncf %44 : vector<16x128xf32> to vector<16x128xbf16>
    %c0_24 = arith.constant 0 : index
    %c0_25 = arith.constant 0 : index
    %46 = vector.load %arg5[%c0_24, %c0_25] : memref<128x128xbf16, #tpu.memory_space<vmem>>, vector<128x128xbf16>
    %cst_26 = arith.constant dense<0.000000e+00> : vector<16x128xf32>
    %47 = tpu.matmul %45, %46, %cst_26 {dimension_numbers = #tpu.dot_dimension_numbers<[1], [0], [0], [1], [0, 0, 1, 1], [], []>} : vector<16x128xbf16>, vector<128x128xbf16>, vector<16x128xf32> -> vector<16x128xf32>
    %48 = vector.broadcast %10 : vector<1x128xf32> to vector<16x128xf32>
    %49 = arith.addf %47, %48 : vector<16x128xf32>
    %50 = arith.addf %38, %49 : vector<16x128xf32>
    %c3_27 = arith.constant 3 : index
    %c0_28 = arith.constant 0 : index
    %51 = vector.load %arg3[%c3_27, %c0_28] : memref<4x128xf32, #tpu.memory_space<vmem>>, vector<1x128xf32>
    %52 = vector.broadcast %51 : vector<1x128xf32> to vector<16x128xf32>
    %53 = arith.mulf %50, %52 : vector<16x128xf32>
    %cst_29 = arith.constant dense<0.000000e+00> : vector<16xf32>
    %54 = vector.multi_reduction <add>, %53, %cst_29 [1] : vector<16x128xf32> to vector<16xf32>
    %55 = vector.shape_cast %54 : vector<16xf32> to vector<16x1xf32>
    %56 = arith.mulf %53, %53 : vector<16x128xf32>
    %cst_30 = arith.constant dense<0.000000e+00> : vector<16xf32>
    %57 = vector.multi_reduction <add>, %56, %cst_30 [1] : vector<16x128xf32> to vector<16xf32>
    %58 = vector.shape_cast %57 : vector<16xf32> to vector<16x1xf32>
    %cst_31 = arith.constant 3.125000e-02 : f32
    %59 = vector.broadcast %cst_31 : f32 to vector<16x1xf32>
    %60 = arith.mulf %55, %59 : vector<16x1xf32>
    %cst_32 = arith.constant 3.125000e-02 : f32
    %61 = vector.broadcast %cst_32 : f32 to vector<16x1xf32>
    %62 = arith.mulf %58, %61 : vector<16x1xf32>
    %63 = arith.mulf %60, %60 : vector<16x1xf32>
    %64 = arith.subf %62, %63 : vector<16x1xf32>
    %cst_33 = arith.constant 1.000000e-03 : f32
    %65 = vector.broadcast %cst_33 : f32 to vector<16x1xf32>
    %66 = arith.addf %64, %65 : vector<16x1xf32>
    %67 = math.rsqrt %66 : vector<16x1xf32>
    %68 = arith.mulf %67, %5 : vector<16x1xf32>
    %69 = arith.mulf %60, %68 : vector<16x1xf32>
    %70 = arith.subf %6, %69 : vector<16x1xf32>
    %71 = vector.broadcast %68 : vector<16x1xf32> to vector<16x128xf32>
    %72 = arith.mulf %53, %71 : vector<16x128xf32>
    %73 = vector.broadcast %70 : vector<16x1xf32> to vector<16x128xf32>
    %74 = arith.addf %72, %73 : vector<16x128xf32>
    %cst_34 = arith.constant 0.000000e+00 : f32
    %75 = vector.broadcast %cst_34 : f32 to vector<16x128xf32>
    %76 = arith.maximumf %74, %75 : vector<16x128xf32>
    %c0_35 = arith.constant 0 : index
    %c0_36 = arith.constant 0 : index
    %77 = vector.load %arg6[%c0_35, %c0_36] : memref<16x16xbf16, #tpu.memory_space<vmem>>, vector<16x16xbf16>
    %78 = arith.truncf %76 : vector<16x128xf32> to vector<16x128xbf16>
    %cst_37 = arith.constant dense<0.000000e+00> : vector<16x128xf32>
    %79 = tpu.matmul %77, %78, %cst_37 {dimension_numbers = #tpu.dot_dimension_numbers<[1], [0], [0], [1], [0, 0, 1, 1], [], []>} : vector<16x16xbf16>, vector<16x128xbf16>, vector<16x128xf32> -> vector<16x128xf32>
    %80 = vector.broadcast %7 : vector<16x1xf32> to vector<16x128xf32>
    %81 = arith.addf %79, %80 : vector<16x128xf32>
    %c0_38 = arith.constant 0 : index
    %c0_39 = arith.constant 0 : index
    %c0_40 = arith.constant 0 : index
    %82 = vector.load %arg1[%c0_38, %c0_39, %c0_40] : memref<1x16x128xf32, #tpu.memory_space<vmem>>, vector<1x16x128xf32>
    %83 = vector.shape_cast %82 : vector<1x16x128xf32> to vector<16x128xf32>
    %84 = arith.addf %81, %83 : vector<16x128xf32>
    %c0_41 = arith.constant 0 : index
    %c0_42 = arith.constant 0 : index
    %c0_43 = arith.constant 0 : index
    %85 = vector.load %arg7[%c0_41, %c0_42, %c0_43] : memref<1x16x128xf32, #tpu.memory_space<vmem>>, vector<1x16x128xf32>
    %86 = vector.shape_cast %85 : vector<1x16x128xf32> to vector<16x128xf32>
    %87 = vector.shape_cast %84 : vector<16x128xf32> to vector<1x16x128xf32>
    tpu.vector_store %arg7[%c0_41, %c0_42, %c0_43], %87 {strides = array<i32>} : memref<1x16x128xf32, #tpu.memory_space<vmem>>, vector<1x16x128xf32>,
    return
  }
  func.func @transform_0(%arg0: i32) -> (i32, i32, i32) {
    %c0_i32 = arith.constant 0 : i32
    %c0_i32_0 = arith.constant 0 : i32
    %c0_i32_1 = arith.constant 0 : i32
    return %arg0, %c0_i32, %c0_i32_0 : i32, i32, i32
  }
  func.func @transform_1(%arg0: i32) -> (i32, i32) {
    %c0_i32 = arith.constant 0 : i32
    %c0_i32_0 = arith.constant 0 : i32
    %c0_i32_1 = arith.constant 0 : i32
    return %c0_i32, %c0_i32_0 : i32, i32
  }
  func.func @transform_2(%arg0: i32) -> (i32, i32) {
    %c0_i32 = arith.constant 0 : i32
    %c0_i32_0 = arith.constant 0 : i32
    %c0_i32_1 = arith.constant 0 : i32
    return %c0_i32, %c0_i32_0 : i32, i32
  }
  func.func @transform_3(%arg0: i32) -> (i32, i32) {
    %c0_i32 = arith.constant 0 : i32
    %c0_i32_0 = arith.constant 0 : i32
    %c0_i32_1 = arith.constant 0 : i32
    return %c0_i32, %c0_i32_0 : i32, i32
  }
  func.func @transform_4(%arg0: i32) -> (i32, i32) {
    %c0_i32 = arith.constant 0 : i32
    %c0_i32_0 = arith.constant 0 : i32
    %c0_i32_1 = arith.constant 0 : i32
    return %c0_i32, %c0_i32_0 : i32, i32
  }
  func.func @transform_5(%arg0: i32) -> (i32, i32) {
    %c0_i32 = arith.constant 0 : i32
    %c0_i32_0 = arith.constant 0 : i32
    %c0_i32_1 = arith.constant 0 : i32
    return %c0_i32, %c0_i32_0 : i32, i32
  }
  func.func @transform_6(%arg0: i32) -> (i32, i32, i32) {
    %c0_i32 = arith.constant 0 : i32
    %c0_i32_0 = arith.constant 0 : i32
    %c0_i32_1 = arith.constant 0 : i32
    return %arg0, %c0_i32, %c0_i32_0 : i32, i32, i32
  }
}

</mosaic_0001>

<llo_original>
// kernel: tpu_custom_call.1
$region0: #{tpu_custom_call.1}
  #allocation0 [shape = 'u32[]', space=smem, size = 0x4, offset = 0x4, fixed_abs, tag = 'smem constant byte address 0x4 - core index']
  #allocation1 [shape = 'u32[72,128]{1,0:T(1,128)}', space=vmem, size = 0x9000, scoped, tag = 'internal scratch']
  %s0 = inlined_call_operand.hbm [shape: f32[2,16,128], index: 0, kind: input, shape index: {}]
  %s1 = inlined_call_operand.vmem [shape: f32[16,6], index: 1, kind: input, shape index: {}]
  %s2 = inlined_call_operand.vmem [shape: f32[4,128], index: 2, kind: input, shape index: {}]
  %s3 = inlined_call_operand.vmem [shape: bf16[16,16], index: 3, kind: input, shape index: {}]
  %s4 = inlined_call_operand.hbm [shape: bf16[128,128], index: 4, kind: input, shape index: {}]
  %s5 = inlined_call_operand.vmem [shape: bf16[16,16], index: 5, kind: input, shape index: {}]
  %s6 = inlined_call_operand.hbm [shape: f32[2,16,128], index: 6, kind: output, shape index: {}]
  %s7 = sld [smem:[#allocation0]]
  $region65: #{tpu_custom_call.1} parent=0
    _
  %s9 = ssub.s32 1, %s7
  %s10 = scalar_select 0, %s9, %s7
  $region1: #{tpu_custom_call.1} parent=0
    #allocation2 [shape = 'u8[16384]{0}', space=vmem, size = 0x4000, scoped, tag = 'input window, operand 0']
    #allocation3 [shape = 's32[2]{0}', space=sflag, size = 0x8, scoped, tag = 'scoped memory for tpu_custom_call.1']
    #allocation4 [shape = 's32[2]{0}', space=sflag, size = 0x8, scoped, tag = 'scoped memory for tpu_custom_call.1']
    #allocation5 [shape = 'u8[32768]{0}', space=vmem, size = 0x8000, scoped, tag = 'input window, operand 4, single buffered']
    #allocation6 [shape = 's32[1]{0}', space=sflag, size = 0x4, scoped, tag = 'scoped memory for tpu_custom_call.1']
    #allocation7 [shape = 'u8[16384]{0}', space=vmem, size = 0x4000, scoped, tag = 'output window, operand 0']
    %11 = vsyncpa [#allocation3], 0
    %s12 = scalar_lea.sflag [#allocation3], 1
    %13 = vsyncpa %s12, 0
    %14 = vsyncpa [#allocation6], 0
    %15 = vsyncpa [#allocation4], 0
    %s16 = scalar_lea.sflag [#allocation4], 1
    %17 = vsyncpa %s16, 0
    loop: start=0, step=1, limit=4
    $region2: #{tpu_custom_call.1} parent=1 // loop_pre_header
      _
    $region3: #{tpu_custom_call.1} parent=1 // loop_header
      %s19 = sphi 0, %s23
      %p20 = scmp.ge.s32.totalorder %s19, 4
      %s29 = sphi 0, %s31
      %s32 = sphi 0, %s29
      %s33 = sphi 0, %s32
      %s49 = sphi 0, %s33
      %s53 = sphi 0, %s53
      %s55 = sphi 0, %s53
      %s56 = sphi 0, %s55
      %s70 = sphi 0, %s56
      %s74 = sphi 0, %s74
      %s76 = sphi 0, %s74
      %s77 = sphi 0, %s76
      %s91 = sphi 0, %s77
      %s95 = sphi 0, %s95
      %s97 = sphi 0, %s95
      %s98 = sphi 0, %s97
      %s112 = sphi 0, %s98
      %s116 = sphi 0, %s116
      %s118 = sphi 0, %s116
      %s119 = sphi 0, %s118
      %s133 = sphi 0, %s119
      %s137 = sphi 0, %s137
      %s139 = sphi 0, %s137
      %s140 = sphi 0, %s139
      %s154 = sphi 0, %s140
      %s160 = sphi 0, %s162
      %s163 = sphi 0, %s160
      %s164 = sphi 0, %s163
      %s180 = sphi 0, %s164
    $region4: #{tpu_custom_call.1} parent=1 // loop_header_branch
      %22 = sbr.rel (%p20) target = $region8
    $region5: #{tpu_custom_call.1} parent=1 // loop_body
      %s24 = ssub.s32 %s19, 1
      %s25 = ssub.s32 %s19, 2
      %s26 = sadd.s32 %s19, 1
      %s27 = ssub.s32 %s19, %s26
      %p28 = scmp.eq.s32.totalorder %s27, 0
      %s30 = sadd.s32 %s29, 1
      %s31 = scalar_select %p28, %s29, %s30
      %p34 = pneg %p28
      %p35 = scmp.eq.s32.totalorder %s19, 1
      %p36 = por %p34, %p35
      %p37 = scmp.ne.s32.totalorder %s29, %s32
      %p38 = scmp.eq.s32.totalorder %s19, 0
      %p39 = por %p37, %p38
      %p40 = scmp.ne.s32.totalorder %s29, %s32
      %p41 = scmp.eq.s32.totalorder %s24, 1
      %p42 = por %p40, %p41
      %p43 = scmp.ne.s32.totalorder %s32, %s33
      %p44 = scmp.eq.s32.totalorder %s24, 0
      %p45 = por %p43, %p44
      %p46 = scmp.ne.s32.totalorder %s32, %s33
      %p47 = scmp.eq.s32.totalorder %s25, 1
      %p48 = por %p46, %p47
      %p50 = scmp.ne.s32.totalorder %s33, %s49
      %p51 = scmp.eq.s32.totalorder %s25, 0
      %p52 = por %p50, %p51
      %s54 = sadd.s32 %s53, 1
      %p57 = scmp.eq.s32.totalorder %s19, 1
      %p58 = scmp.ne.s32.totalorder %s53, %s55
      %p59 = scmp.eq.s32.totalorder %s19, 0
      %p60 = por %p58, %p59
      %p61 = scmp.ne.s32.totalorder %s53, %s55
      %p62 = scmp.eq.s32.totalorder %s24, 1
      %p63 = por %p61, %p62
      %p64 = scmp.ne.s32.totalorder %s55, %s56
      %p65 = scmp.eq.s32.totalorder %s24, 0
      %p66 = por %p64, %p65
      %p67 = scmp.ne.s32.totalorder %s55, %s56
      %p68 = scmp.eq.s32.totalorder %s25, 1
      %p69 = por %p67, %p68
      %p71 = scmp.ne.s32.totalorder %s56, %s70
      %p72 = scmp.eq.s32.totalorder %s25, 0
      %p73 = por %p71, %p72
      %s75 = sadd.s32 %s74, 1
      %p78 = scmp.eq.s32.totalorder %s19, 1
      %p79 = scmp.ne.s32.totalorder %s74, %s76
      %p80 = scmp.eq.s32.totalorder %s19, 0
      %p81 = por %p79, %p80
      %p82 = scmp.ne.s32.totalorder %s74, %s76
      %p83 = scmp.eq.s32.totalorder %s24, 1
      %p84 = por %p82, %p83
      %p85 = scmp.ne.s32.totalorder %s76, %s77
      %p86 = scmp.eq.s32.totalorder %s24, 0
      %p87 = por %p85, %p86
      %p88 = scmp.ne.s32.totalorder %s76, %s77
      %p89 = scmp.eq.s32.totalorder %s25, 1
      %p90 = por %p88, %p89
      %p92 = scmp.ne.s32.totalorder %s77, %s91
      %p93 = scmp.eq.s32.totalorder %s25, 0
      %p94 = por %p92, %p93
      %s96 = sadd.s32 %s95, 1
      %p99 = scmp.eq.s32.totalorder %s19, 1
      %p100 = scmp.ne.s32.totalorder %s95, %s97
      %p101 = scmp.eq.s32.totalorder %s19, 0
      %p102 = por %p100, %p101
      %p103 = scmp.ne.s32.totalorder %s95, %s97
      %p104 = scmp.eq.s32.totalorder %s24, 1
      %p105 = por %p103, %p104
      %p106 = scmp.ne.s32.totalorder %s97, %s98
      %p107 = scmp.eq.s32.totalorder %s24, 0
      %p108 = por %p106, %p107
      %p109 = scmp.ne.s32.totalorder %s97, %s98
      %p110 = scmp.eq.s32.totalorder %s25, 1
      %p111 = por %p109, %p110
      %p113 = scmp.ne.s32.totalorder %s98, %s112
      %p114 = scmp.eq.s32.totalorder %s25, 0
      %p115 = por %p113, %p114
      %s117 = sadd.s32 %s116, 1
      %p120 = scmp.eq.s32.totalorder %s19, 1
      %p121 = scmp.ne.s32.totalorder %s116, %s118
      %p122 = scmp.eq.s32.totalorder %s19, 0
      %p123 = por %p121, %p122
      %p124 = scmp.ne.s32.totalorder %s116, %s118
      %p125 = scmp.eq.s32.totalorder %s24, 1
      %p126 = por %p124, %p125
      %p127 = scmp.ne.s32.totalorder %s118, %s119
      %p128 = scmp.eq.s32.totalorder %s24, 0
      %p129 = por %p127, %p128
      %p130 = scmp.ne.s32.totalorder %s118, %s119
      %p131 = scmp.eq.s32.totalorder %s25, 1
      %p132 = por %p130, %p131
      %p134 = scmp.ne.s32.totalorder %s119, %s133
      %p135 = scmp.eq.s32.totalorder %s25, 0
      %p136 = por %p134, %p135
      %s138 = sadd.s32 %s137, 1
      %p141 = scmp.eq.s32.totalorder %s19, 1
      %p142 = scmp.ne.s32.totalorder %s137, %s139
      %p143 = scmp.eq.s32.totalorder %s19, 0
      %p144 = por %p142, %p143
      %p145 = scmp.ne.s32.totalorder %s137, %s139
      %p146 = scmp.eq.s32.totalorder %s24, 1
      %p147 = por %p145, %p146
      %p148 = scmp.ne.s32.totalorder %s139, %s140
      %p149 = scmp.eq.s32.totalorder %s24, 0
      %p150 = por %p148, %p149
      %p151 = scmp.ne.s32.totalorder %s139, %s140
      %p152 = scmp.eq.s32.totalorder %s25, 1
      %p153 = por %p151, %p152
      %p155 = scmp.ne.s32.totalorder %s140, %s154
      %p156 = scmp.eq.s32.totalorder %s25, 0
      %p157 = por %p155, %p156
      %s158 = ssub.s32 %s19, %s26
      %p159 = scmp.eq.s32.totalorder %s158, 0
      %s161 = sadd.s32 %s160, 1
      %s162 = scalar_select %p159, %s160, %s161
      %p165 = pneg %p159
      %p166 = scmp.eq.s32.totalorder %s19, 1
      %p167 = por %p165, %p166
      %p168 = scmp.ne.s32.totalorder %s160, %s163
      %p169 = scmp.eq.s32.totalorder %s19, 0
      %p170 = por %p168, %p169
      %p171 = scmp.ne.s32.totalorder %s160, %s163
      %p172 = scmp.eq.s32.totalorder %s24, 1
      %p173 = por %p171, %p172
      %p174 = scmp.ne.s32.totalorder %s163, %s164
      %p175 = scmp.eq.s32.totalorder %s24, 0
      %p176 = por %p174, %p175
      %p177 = scmp.ne.s32.totalorder %s163, %s164
      %p178 = scmp.eq.s32.totalorder %s25, 1
      %p179 = por %p177, %p178
      %p181 = scmp.ne.s32.totalorder %s164, %s180
      %p182 = scmp.eq.s32.totalorder %s25, 0
      %p183 = por %p181, %p182
      %p184 = scmp.le.s32.totalorder 1, %s19
      %p185 = scmp.lt.s32.totalorder %s19, 3
      %p186 = pnand %p184, %p185
      %p187 = pneg %p186
      // Predicated region
      $region9: #{tpu_custom_call.1} parent=5 // pred_check
        _
      $region10: #{tpu_custom_call.1} parent=5 // pred_check_branch
        %189 = sbr.rel (%p186) target = $region12
      $region11: #{tpu_custom_call.1} parent=5 // pred_region
        %s190 = ssub.s32 %s19, 1
        // Predicated region
        $region13: #{tpu_custom_call.1} parent=11 // pred_check
          %p191 = pneg %p66
        $region14: #{tpu_custom_call.1} parent=11 // pred_check_branch
          %193 = sbr.rel (%p191) target = $region16
        $region15: #{tpu_custom_call.1} parent=11 // pred_region
          _
        $region16: #{tpu_custom_call.1} parent=11 // pred_fallthru
          _
        // Predicated region
        $region17: #{tpu_custom_call.1} parent=11 // pred_check
          %p194 = pneg %p87
        $region18: #{tpu_custom_call.1} parent=11 // pred_check_branch
          %196 = sbr.rel (%p194) target = $region20
        $region19: #{tpu_custom_call.1} parent=11 // pred_region
          _
        $region20: #{tpu_custom_call.1} parent=11 // pred_fallthru
          _
        // Predicated region
        $region21: #{tpu_custom_call.1} parent=11 // pred_check
          %p197 = pneg %p108
        $region22: #{tpu_custom_call.1} parent=11 // pred_check_branch
          %199 = sbr.rel (%p197) target = $region24
        $region23: #{tpu_custom_call.1} parent=11 // pred_region
          _
        $region24: #{tpu_custom_call.1} parent=11 // pred_fallthru
          _
        // Predicated region
        $region25: #{tpu_custom_call.1} parent=11 // pred_check
          %p200 = pneg %p129
        $region26: #{tpu_custom_call.1} parent=11 // pred_check_branch
          %202 = sbr.rel (%p200) target = $region28
        $region27: #{tpu_custom_call.1} parent=11 // pred_region
          %204 = vsyncadd [#allocation6], 0
          %s205 = sshll.u32 %s4, 4
          %s206 = int_to_ptr.hbm [resolvable:$true] %s205
          %s207 = sshll.u32 [#allocation5], 4
          %s208 = int_to_ptr.vmem [resolvable:$true] %s207
          %213 = dma.hbm_to_vmem [thread:$0]  %s206, 1024, %s208, [#allocation6], 64, 64, 4
        $region28: #{tpu_custom_call.1} parent=11 // pred_fallthru
          _
        // Predicated region
        $region29: #{tpu_custom_call.1} parent=11 // pred_check
          %p214 = pneg %p150
        $region30: #{tpu_custom_call.1} parent=11 // pred_check_branch
          %216 = sbr.rel (%p214) target = $region32
        $region31: #{tpu_custom_call.1} parent=11 // pred_region
          _
        $region32: #{tpu_custom_call.1} parent=11 // pred_fallthru
          _
      $region12: #{tpu_custom_call.1} parent=5 // pred_fallthru
        _
      %p217 = scmp.lt.s32.totalorder %s19, 2
      // Predicated region
      $region33: #{tpu_custom_call.1} parent=5 // pred_check
        %p218 = pneg %p217
      $region34: #{tpu_custom_call.1} parent=5 // pred_check_branch
        %220 = sbr.rel (%p218) target = $region36
      $region35: #{tpu_custom_call.1} parent=5 // pred_region
        // Predicated region
        $region37: #{tpu_custom_call.1} parent=35 // pred_check
          %p221 = pneg %p39
        $region38: #{tpu_custom_call.1} parent=35 // pred_check_branch
          %223 = sbr.rel (%p221) target = $region40
        $region39: #{tpu_custom_call.1} parent=35 // pred_region
          %s224 = sand.u32 %s29, 1
          %s225 = scalar_lea.sflag [#allocation3], %s224
          %s226 = sand.u32 %s29, 1
          %s227 = smul.addr %s226, 16
          %s228 = scalar_lea.vmem [#allocation2], %s227
          %230 = vsyncadd %s225, 0
          %s231 = smul.addr %s19, 2
          %s232 = smul.addr %s231, 8
          %s233 = scalar_lea.hbm %s0, %s232
          %s234 = sshll.u32 %s233, 4
          %s235 = int_to_ptr.hbm [resolvable:$true] %s234
          %s236 = sshll.u32 %s228, 4
          %s237 = int_to_ptr.vmem [resolvable:$true] %s236
          %242 = dma.hbm_to_vmem [thread:$0]  %s235, 256, %s237, %s225, 128, 128, 8
        $region40: #{tpu_custom_call.1} parent=35 // pred_fallthru
          _
      $region36: #{tpu_custom_call.1} parent=5 // pred_fallthru
        _
      %p243 = scmp.le.s32.totalorder 1, %s19
      %p244 = scmp.lt.s32.totalorder %s19, 3
      %p245 = pnand %p243, %p244
      %p246 = pneg %p245
      // Predicated region
      $region41: #{tpu_custom_call.1} parent=5 // pred_check
        _
      $region42: #{tpu_custom_call.1} parent=5 // pred_check_branch
        %248 = sbr.rel (%p245) target = $region44
      $region43: #{tpu_custom_call.1} parent=5 // pred_region
        %s249 = ssub.s32 %s19, 1
        %s250 = sand.u32 %s32, 1
        %s251 = scalar_lea.sflag [#allocation3], %s250
        %s252 = sand.u32 %s32, 1
        %s253 = smul.addr %s252, 16
        %s254 = scalar_lea.vmem [#allocation2], %s253
        // Predicated region
        $region45: #{tpu_custom_call.1} parent=43 // pred_check
          %p255 = pneg %p45
        $region46: #{tpu_custom_call.1} parent=43 // pred_check_branch
          %257 = sbr.rel (%p255) target = $region48
        $region47: #{tpu_custom_call.1} parent=43 // pred_region
          %259 = dma.done %s251, 256
        $region48: #{tpu_custom_call.1} parent=43 // pred_fallthru
          _
        // Predicated region
        $region49: #{tpu_custom_call.1} parent=43 // pred_check
          %p260 = pneg %p129
        $region50: #{tpu_custom_call.1} parent=43 // pred_check_branch
          %262 = sbr.rel (%p260) target = $region52
        $region51: #{tpu_custom_call.1} parent=43 // pred_region
          %264 = dma.done [#allocation6], 1024
        $region52: #{tpu_custom_call.1} parent=43 // pred_fallthru
          _
        %s265 = sand.u32 %s32, 1
        %s266 = scalar_lea.sflag [#allocation3], %s265
        %s267 = sand.u32 %s32, 1
        %s268 = smul.addr %s267, 16
        %s269 = scalar_lea.vmem [#allocation2], %s268
        %p270 = pneg %p45
        %p271 = pneg %p42
        %p272 = pneg %p66
        %p273 = pneg %p63
        %p274 = pneg %p87
        %p275 = pneg %p84
        %p276 = pneg %p108
        %p277 = pneg %p105
        %p278 = pneg %p129
        %p279 = pneg %p126
        %p280 = pneg %p150
        %p281 = pneg %p147
        %p282 = pneg %p176
        %p283 = pneg %p173
        %s284 = sand.u32 %s163, 1
        %s285 = scalar_lea.sflag [#allocation4], %s284
        %s286 = sand.u32 %s163, 1
        %s287 = smul.addr %s286, 16
        %s288 = scalar_lea.vmem [#allocation7], %s287
        %v290 = vld [vmem:[%s254] sm:$0xff]
        %v291 = vld [vmem:[%s254 + $0x8] sm:$0xff]
        %v292 = vld [vmem:[%s1] sm:$0xff]
        %v293 = vld [vmem:[%s1 + $0x8] sm:$0xff]
        %v294 = vld [vmem:[%s2] sm:$0x1]
        %v295 = vld [vmem:[%s2 + $0x1] sm:$0x1]
        %v296 = vld [vmem:[%s2 + $0x2] sm:$0x1]
        %297 = vadd.xlane.f32.xlu0 %v290
        %v298 = vpop.xlane.xlu0 %297
        %299 = vadd.xlane.f32.xlu0 %v291
        %v300 = vpop.xlane.xlu0 %299
        %v301 = vmul.f32 %v290, %v290
        %v302 = vmul.f32 %v291, %v291
        %303 = vadd.xlane.f32.xlu0 %v301
        %v304 = vpop.xlane.xlu0 %303
        %305 = vadd.xlane.f32.xlu0 %v302
        %v306 = vpop.xlane.xlu0 %305
        %v307 = vmul.f32 %v298, 0.03125
        %v308 = vmul.f32 %v300, 0.03125
        %v309 = vmul.f32 %v304, 0.03125
        %v310 = vmul.f32 %v306, 0.03125
        %v311 = vmul.f32 %v307, %v307
        %v312 = vmul.f32 %v308, %v308
        %v313 = vsub.f32 %v309, %v311
        %v314 = vsub.f32 %v310, %v312
        %v315 = vadd.f32 %v313, 0.001
        %v316 = vadd.f32 %v314, 0.001
        %v317 = vrsqrt.pop %v315
        %v318 = vmul.f32 %v317, %v315
        %v319 = vmul.f32 %v318, %v317
        %v320 = vmul.f32 0.5, %v319
        %v321 = vsub.f32 1.5, %v320
        %v322 = vmul.f32 %v317, %v321
        %vm323 = vweird.f32 %v315
        %vm324 = vweird.f32 %v317
        %vm325 = vmor %vm323, %vm324
        %v326 = vsel %vm325, %v317, %v322
        %v327 = vrsqrt.pop %v316
        %v328 = vmul.f32 %v327, %v316
        %v329 = vmul.f32 %v328, %v327
        %v330 = vmul.f32 0.5, %v329
        %v331 = vsub.f32 1.5, %v330
        %v332 = vmul.f32 %v327, %v331
        %vm333 = vweird.f32 %v316
        %vm334 = vweird.f32 %v327
        %vm335 = vmor %vm333, %vm334
        %v336 = vsel %vm335, %v327, %v332
        %v337 = vmul.f32 %v326, %v292
        %v338 = vmul.f32 %v336, %v293
        %v339 = vmul.f32 %v307, %v337
        %v340 = vmul.f32 %v308, %v338
        %343 = vrot.lane.b32.xlu0 %v339, 1
        %v344 = vpop.permute.xlu0 %343
        %345 = vrot.lane.b32.xlu0 %v340, 1
        %v346 = vpop.permute.xlu0 %345
        %v349 = vsub.f32 %v292, %v344
        %v350 = vsub.f32 %v293, %v346
        %352 = vset.pattern.permute.xlu0 0
        %353 = vperm.xlu0 %352, %v337
        %v354 = vpop.permute.xlu0 %353
        %357 = vset.pattern.permute.xlu0 0
        %358 = vperm.xlu0 %357, %v338
        %v359 = vpop.permute.xlu0 %358
        %v361 = vmul.f32 %v290, %v354
        %v362 = vmul.f32 %v291, %v359
        %364 = vset.pattern.permute.xlu0 1
        %365 = vperm.xlu0 %364, %v349
        %v366 = vpop.permute.xlu0 %365
        %369 = vset.pattern.permute.xlu0 1
        %370 = vperm.xlu0 %369, %v350
        %v371 = vpop.permute.xlu0 %370
        %v373 = vadd.f32 %v361, %v366
        %v374 = vadd.f32 %v362, %v371
        %v375 = vmax.f32 %v373, 0.0
        %v376 = vmax.f32 %v374, 0.0
        %v377 = vld [vmem:[%s3] sm:$0xf]
        %v378 = vld [vmem:[%s3 + $0x4] sm:$0xf]
        %v379 = vpack.c.bf16 %v376, %v375
        %381 = vset.pattern.permute.xlu0 2
        %382 = vperm.xlu0 %381, %v292
        %v383 = vpop.permute.xlu0 %382
        %386 = vset.pattern.permute.xlu0 2
        %387 = vperm.xlu0 %386, %v293
        %v388 = vpop.permute.xlu0 %387
        %v392 = vunpack.c.l.b16 %v377
        %v393 = vunpack.c.l.b16 %v378
        %v394 = vpack.c.b16 %v393, %v392
        %vm395 = vcmask 130048
        %v397 = vsel %vm395, %v394, 0
        %399 = vmatpush.bf16.msra.mxu0 0
        %400 = vmatpush.bf16.msra.mxu0 0
        %401 = vmatpush.bf16.msra.mxu0 0
        %402 = vmatpush.bf16.msra.mxu0 0
        %403 = vmatpush.bf16.msra.mxu0 0
        %404 = vmatpush.bf16.msra.mxu0 0
        %405 = vmatpush.bf16.msra.mxu0 0
        %406 = vmatpush.bf16.msra.mxu0 %v379
        %407 = vmatmul.bf16.gmra.mxu0 %v397
        %v408 = vpop.f32.mrf.mxu0
        %v409 = vadd.f32 %v383, %v408
        %v410 = vpop.f32.mrf.mxu0
        %v411 = vadd.f32 %v388, %v410
        %412 = vdwg.mxu0
        %v413 = vperm.slane %v294, 0
        %v414 = vmul.f32 %v409, %v413
        %v415 = vmul.f32 %v411, %v413
        %v416 = vperm.slane %v295, 0
        %v417 = vadd.f32 %v414, %v416
        %v418 = vadd.f32 %v415, %v416
        %v419 = vmax.f32 %v417, 0.0
        %v420 = vmax.f32 %v418, 0.0
        %v421 = vpack.c.bf16 %v420, %v419
        %v422 = vld [vmem:[#allocation5] sm:$0xf]
        %v423 = vld [vmem:[#allocation5 + $0x4] sm:$0xf]
        %v424 = vld [vmem:[#allocation5 + $0x8] sm:$0xf]
        %v425 = vld [vmem:[#allocation5 + $0xc] sm:$0xf]
        %v426 = vld [vmem:[#allocation5 + $0x10] sm:$0xf]
        %v427 = vld [vmem:[#allocation5 + $0x14] sm:$0xf]
        %v428 = vld [vmem:[#allocation5 + $0x18] sm:$0xf]
        %v429 = vld [vmem:[#allocation5 + $0x1c] sm:$0xf]
        %v430 = vld [vmem:[#allocation5 + $0x20] sm:$0xf]
        %v431 = vld [vmem:[#allocation5 + $0x24] sm:$0xf]
        %v432 = vld [vmem:[#allocation5 + $0x28] sm:$0xf]
        %v433 = vld [vmem:[#allocation5 + $0x2c] sm:$0xf]
        %v434 = vld [vmem:[#allocation5 + $0x30] sm:$0xf]
        %v435 = vld [vmem:[#allocation5 + $0x34] sm:$0xf]
        %v436 = vld [vmem:[#allocation5 + $0x38] sm:$0xf]
        %v437 = vld [vmem:[#allocation5 + $0x3c] sm:$0xf]
        %v438 = vperm.slane %v296, 0
        %v455 = vunpack.c.l.b16 %v422
        %v456 = vunpack.c.l.b16 %v423
        %v457 = vunpack.c.l.b16 %v424
        %v458 = vunpack.c.l.b16 %v425
        %v459 = vunpack.c.l.b16 %v426
        %v460 = vunpack.c.l.b16 %v427
        %v461 = vunpack.c.l.b16 %v428
        %v462 = vunpack.c.l.b16 %v429
        %v463 = vunpack.c.l.b16 %v430
        %v464 = vunpack.c.l.b16 %v431
        %v465 = vunpack.c.l.b16 %v432
        %v466 = vunpack.c.l.b16 %v433
        %v467 = vunpack.c.l.b16 %v434
        %v468 = vunpack.c.l.b16 %v435
        %v469 = vunpack.c.l.b16 %v436
        %v470 = vunpack.c.l.b16 %v437
        %v471 = vpack.c.b16 %v456, %v455
        %v472 = vpack.c.b16 %v458, %v457
        %v473 = vpack.c.b16 %v460, %v459
        %v474 = vpack.c.b16 %v462, %v461
        %v475 = vpack.c.b16 %v464, %v463
        %v476 = vpack.c.b16 %v466, %v465
        %v477 = vpack.c.b16 %v468, %v467
        %v478 = vpack.c.b16 %v470, %v469
        %487 = vmatpush.bf16.msra.mxu0 %v478
        %488 = vmatpush.bf16.msra.mxu0 %v477
        %489 = vmatpush.bf16.msra.mxu0 %v476
        %490 = vmatpush.bf16.msra.mxu0 %v475
        %491 = vmatpush.bf16.msra.mxu0 %v474
        %492 = vmatpush.bf16.msra.mxu0 %v473
        %493 = vmatpush.bf16.msra.mxu0 %v472
        %494 = vmatpush.bf16.msra.mxu0 %v471
        %495 = vmatmul.bf16.gmra.mxu0 %v421
        %v496 = vpop.f32.mrf.mxu0
        %v497 = vadd.f32 %v438, %v496
        %v498 = vpop.f32.mrf.mxu0
        %v499 = vadd.f32 %v438, %v498
        %500 = vdwg.mxu0
        %v501 = vadd.f32 %v409, %v497
        %v502 = vadd.f32 %v411, %v499
        %v503 = vld [vmem:[%s2 + $0x3] sm:$0x1]
        %v504 = vperm.slane %v503, 0
        %v505 = vmul.f32 %v501, %v504
        %v506 = vmul.f32 %v502, %v504
        %507 = vadd.xlane.f32.xlu0 %v505
        %v508 = vpop.xlane.xlu0 %507
        %509 = vadd.xlane.f32.xlu0 %v506
        %v510 = vpop.xlane.xlu0 %509
        %v511 = vmul.f32 %v505, %v505
        %v512 = vmul.f32 %v506, %v506
        %513 = vadd.xlane.f32.xlu0 %v511
        %v514 = vpop.xlane.xlu0 %513
        %515 = vadd.xlane.f32.xlu0 %v512
        %v516 = vpop.xlane.xlu0 %515
        %v517 = vmul.f32 %v508, 0.03125
        %v518 = vmul.f32 %v510, 0.03125
        %v519 = vmul.f32 %v514, 0.03125
        %v520 = vmul.f32 %v516, 0.03125
        %v521 = vmul.f32 %v517, %v517
        %v522 = vmul.f32 %v518, %v518
        %v523 = vsub.f32 %v519, %v521
        %v524 = vsub.f32 %v520, %v522
        %v525 = vadd.f32 %v523, 0.001
        %v526 = vadd.f32 %v524, 0.001
        %v527 = vrsqrt.pop %v525
        %v528 = vmul.f32 %v527, %v525
        %v529 = vmul.f32 %v528, %v527
        %v530 = vmul.f32 0.5, %v529
        %v531 = vsub.f32 1.5, %v530
        %v532 = vmul.f32 %v527, %v531
        %vm533 = vweird.f32 %v525
        %vm534 = vweird.f32 %v527
        %vm535 = vmor %vm533, %vm534
        %v536 = vsel %vm535, %v527, %v532
        %v537 = vrsqrt.pop %v526
        %v538 = vmul.f32 %v537, %v526
        %v539 = vmul.f32 %v538, %v537
        %v540 = vmul.f32 0.5, %v539
        %v541 = vsub.f32 1.5, %v540
        %v542 = vmul.f32 %v537, %v541
        %vm543 = vweird.f32 %v526
        %vm544 = vweird.f32 %v537
        %vm545 = vmor %vm543, %vm544
        %v546 = vsel %vm545, %v537, %v542
        %v547 = vmul.f32 %v536, %v292
        %v548 = vmul.f32 %v546, %v293
        %v549 = vmul.f32 %v517, %v547
        %v550 = vmul.f32 %v518, %v548
        %553 = vrot.lane.b32.xlu0 %v549, 1
        %v554 = vpop.permute.xlu0 %553
        %555 = vrot.lane.b32.xlu0 %v550, 1
        %v556 = vpop.permute.xlu0 %555
        %v559 = vsub.f32 %v292, %v554
        %v560 = vsub.f32 %v293, %v556
        %562 = vset.pattern.permute.xlu0 3
        %563 = vperm.xlu0 %562, %v547
        %v564 = vpop.permute.xlu0 %563
        %567 = vset.pattern.permute.xlu0 3
        %568 = vperm.xlu0 %567, %v548
        %v569 = vpop.permute.xlu0 %568
        %v571 = vmul.f32 %v505, %v564
        %v572 = vmul.f32 %v506, %v569
        %574 = vset.pattern.permute.xlu0 4
        %575 = vperm.xlu0 %574, %v559
        %v576 = vpop.permute.xlu0 %575
        %579 = vset.pattern.permute.xlu0 4
        %580 = vperm.xlu0 %579, %v560
        %v581 = vpop.permute.xlu0 %580
        %v583 = vadd.f32 %v571, %v576
        %v584 = vadd.f32 %v572, %v581
        %v585 = vmax.f32 %v583, 0.0
        %v586 = vmax.f32 %v584, 0.0
        %v587 = vld [vmem:[%s5] sm:$0xf]
        %v588 = vld [vmem:[%s5 + $0x4] sm:$0xf]
        %v589 = vpack.c.bf16 %v586, %v585
        %590 = vset.pattern.permute.xlu0 5
        %591 = vperm.xlu0 %590, %v292
        %v592 = vpop.permute.xlu0 %591
        %594 = vset.pattern.permute.xlu0 5
        %595 = vperm.xlu0 %594, %v293
        %v596 = vpop.permute.xlu0 %595
        %v600 = vunpack.c.l.b16 %v587
        %v601 = vunpack.c.l.b16 %v588
        %v602 = vpack.c.b16 %v601, %v600
        %v604 = vsel %vm395, %v602, 0
        %606 = vmatpush.bf16.msra.mxu0 0
        %607 = vmatpush.bf16.msra.mxu0 0
        %608 = vmatpush.bf16.msra.mxu0 0
        %609 = vmatpush.bf16.msra.mxu0 0
        %610 = vmatpush.bf16.msra.mxu0 0
        %611 = vmatpush.bf16.msra.mxu0 0
        %612 = vmatpush.bf16.msra.mxu0 0
        %613 = vmatpush.bf16.msra.mxu0 %v589
        %614 = vmatmul.bf16.gmra.mxu0 %v604
        %v615 = vpop.f32.mrf.mxu0
        %v616 = vadd.f32 %v592, %v615
        %v617 = vpop.f32.mrf.mxu0
        %v618 = vadd.f32 %v596, %v617
        %619 = vdwg.mxu0
        %v620 = vadd.f32 %v616, %v290
        %v621 = vadd.f32 %v618, %v291
        %622 = vst [vmem:[%s288] sm:$0xff] %v620
        %623 = vst [vmem:[%s288 + $0x8] sm:$0xff] %v621
        %s624 = sand.u32 %s163, 1
        %s625 = scalar_lea.sflag [#allocation4], %s624
        %s626 = sand.u32 %s163, 1
        %s627 = smul.addr %s626, 16
        %s628 = scalar_lea.vmem [#allocation7], %s627
        // Predicated region
        $region53: #{tpu_custom_call.1} parent=43 // pred_check
          %p629 = pneg %p173
        $region54: #{tpu_custom_call.1} parent=43 // pred_check_branch
          %631 = sbr.rel (%p629) target = $region56
        $region55: #{tpu_custom_call.1} parent=43 // pred_region
          %633 = vsyncadd %s625, 0
          %s634 = smul.addr %s24, 2
          %s635 = smul.addr %s634, 8
          %s636 = scalar_lea.hbm %s6, %s635
          %s637 = sshll.u32 %s628, 4
          %s638 = int_to_ptr.vmem [resolvable:$true] %s637
          %s639 = sshll.u32 %s636, 4
          %s640 = int_to_ptr.hbm [resolvable:$true] %s639
          %645 = dma.vmem_to_hbm [thread:$0]  %s638, 256, %s640, %s625, 128, 128, 8
        $region56: #{tpu_custom_call.1} parent=43 // pred_fallthru
          _
      $region44: #{tpu_custom_call.1} parent=5 // pred_fallthru
        _
      %p646 = scmp.le.s32.totalorder 2, %s19
      // Predicated region
      $region57: #{tpu_custom_call.1} parent=5 // pred_check
        %p647 = pneg %p646
      $region58: #{tpu_custom_call.1} parent=5 // pred_check_branch
        %649 = sbr.rel (%p647) target = $region60
      $region59: #{tpu_custom_call.1} parent=5 // pred_region
        %s650 = ssub.s32 %s19, 2
        // Predicated region
        $region61: #{tpu_custom_call.1} parent=59 // pred_check
          %p651 = pneg %p179
        $region62: #{tpu_custom_call.1} parent=59 // pred_check_branch
          %653 = sbr.rel (%p651) target = $region64
        $region63: #{tpu_custom_call.1} parent=59 // pred_region
          %s654 = sand.u32 %s164, 1
          %s655 = scalar_lea.sflag [#allocation4], %s654
          %s656 = sand.u32 %s164, 1
          %s657 = smul.addr %s656, 16
          %s658 = scalar_lea.vmem [#allocation7], %s657
          %660 = dma.done %s655, 256
        $region64: #{tpu_custom_call.1} parent=59 // pred_fallthru
          _
      $region60: #{tpu_custom_call.1} parent=5 // pred_fallthru
        _
    $region6: #{tpu_custom_call.1} parent=1 // loop_footer
      %s23 = sadd.s32 1, %s19
    $region7: #{tpu_custom_call.1} parent=1 // loop_footer_branch
      %18 = sbr.rel target = $region3
    $region8: #{tpu_custom_call.1} parent=1 // loop_exit
      _
    %661 = vsyncpa [#allocation3], 1
    %s662 = scalar_lea.sflag [#allocation3], 1
    %663 = vsyncpa %s662, 1
    %664 = vsyncpa [#allocation6], 1
    %665 = vsyncpa [#allocation4], 1
    %s666 = scalar_lea.sflag [#allocation4], 1
    %667 = vsyncpa %s666, 1

</llo_original>
